<compile_context>
chip_gen: v5e
topology: v5e:2x2
jax: 0.10.0
libtpu: 0.0.40
codegen_flags: <defaults>
</compile_context>

<pallas_src>
import jax
import jax.numpy as jnp
from jax.experimental import pallas as pl
from jax.experimental.pallas import tpu as pltpu


def _round_up(x, m):
    return ((x + m - 1) // m) * m


def deterministic_net_kernel(x_ref, w1_ref, b1_ref, w2_ref, b2_ref,
                             w3_ref, b3_ref, o_ref):
    """Fused MLP forward on one batch tile:
       relu(xW1+b1) -> relu(.W2+b2) -> tanh(.W3+b3)."""
    x = x_ref[...]                                      # bf16 [TM, in]

    h1 = jnp.dot(x, w1_ref[...],
                 preferred_element_type=jnp.float32) + b1_ref[0]
    h1 = jnp.maximum(h1, 0.0).astype(jnp.bfloat16)      # bf16 [TM, H]

    h2 = jnp.dot(h1, w2_ref[...],
                 preferred_element_type=jnp.float32) + b2_ref[0]
    h2 = jnp.maximum(h2, 0.0).astype(jnp.bfloat16)      # bf16 [TM, H]

    h3 = jnp.dot(h2, w3_ref[...],
                 preferred_element_type=jnp.float32) + b3_ref[0]
    o_ref[...] = jnp.tanh(h3).astype(o_ref.dtype)       # f32 [TM, out]


def deterministic_net_forward(state, params, tm=256):
    """state: [B, num_inputs] f32. params: dict of w1,b1,w2,b2,w3,b3 (f32).

    Returns f32 [B, num_outputs] actions in (-1, 1).
    """
    B, num_inputs = state.shape
    hidden_dim = params["w1"].shape[1]
    num_outputs = params["w3"].shape[1]

    # Batch tile: multiple of 8 (sublane granularity); cap at `tm`.
    TM = min(_round_up(tm, 8), _round_up(B, 8))
    Bp = _round_up(B, TM)
    if Bp != B:
        state = jnp.pad(state, ((0, Bp - B), (0, 0)))

    # bf16 operands for the MXU; biases stay f32 (added on the f32 accumulator).
    x_bf = state.astype(jnp.bfloat16)
    w1 = params["w1"].astype(jnp.bfloat16)
    w2 = params["w2"].astype(jnp.bfloat16)
    w3 = params["w3"].astype(jnp.bfloat16)
    b1, b2, b3 = params["b1"], params["b2"], params["b3"]

    grid = (Bp // TM,)
    const = lambda i: (0, 0)   # weights/biases stay resident across grid steps

    out = pl.pallas_call(
        deterministic_net_kernel,
        out_shape=jax.ShapeDtypeStruct((Bp, num_outputs), jnp.float32),
        grid=grid,
        in_specs=[
            pl.BlockSpec((TM, num_inputs), lambda i: (i, 0)),       # x tile
            pl.BlockSpec((num_inputs, hidden_dim), const),          # w1
            pl.BlockSpec((1, hidden_dim), const),                   # b1
            pl.BlockSpec((hidden_dim, hidden_dim), const),          # w2
            pl.BlockSpec((1, hidden_dim), const),                   # b2
            pl.BlockSpec((hidden_dim, num_outputs), const),         # w3
            pl.BlockSpec((1, num_outputs), const),                  # b3
        ],
        out_specs=pl.BlockSpec((TM, num_outputs), lambda i: (i, 0)),
        compiler_params=pltpu.CompilerParams(
            dimension_semantics=("parallel",)),
    )(x_bf, w1, b1, w2, b2, w3, b3)

    return out[:B]


def xavier_uniform(key, fan_in, fan_out, gain=1.0):
    """Matches torch.nn.init.xavier_uniform_ (gain=1); [in, out] layout."""
    limit = gain * jnp.sqrt(6.0 / (fan_in + fan_out))
    return jax.random.uniform(key, (fan_in, fan_out), jnp.float32,
                              minval=-limit, maxval=limit)


def init_params(key, num_inputs, num_outputs, hidden_dim=64):
    k1, k2, k3 = jax.random.split(key, 3)
    return {
        "w1": xavier_uniform(k1, num_inputs, hidden_dim),
        "b1": jnp.zeros((1, hidden_dim), jnp.float32),
        "w2": xavier_uniform(k2, hidden_dim, hidden_dim),
        "b2": jnp.zeros((1, hidden_dim), jnp.float32),
        "w3": xavier_uniform(k3, hidden_dim, num_outputs),
        "b3": jnp.zeros((1, num_outputs), jnp.float32),
    }


def _reference(state, params):
    h = jnp.maximum(state @ params["w1"] + params["b1"], 0.0)
    h = jnp.maximum(h @ params["w2"] + params["b2"], 0.0)
    return jnp.tanh(h @ params["w3"] + params["b3"])


if __name__ == "__main__":
    key = jax.random.PRNGKey(0)
    k_params, k_state1, k_state2 = jax.random.split(key, 3)

    num_inputs = 16
    num_outputs = 8
    hidden_dim = 64
    params = init_params(k_params, num_inputs, num_outputs, hidden_dim)

    # Case 1: tiny batch (single grid step, TM = 8).
    state_small = jax.random.normal(k_state1, (8, num_inputs), jnp.float32)
    act_small = jax.block_until_ready(
        deterministic_net_forward(state_small, params))
    ref_small = _reference(state_small, params)
    assert act_small.shape == (8, num_outputs)
    # bf16 operands / f32 accumulation -> loosened tolerance.
    assert jnp.allclose(act_small, ref_small, atol=2e-2, rtol=2e-2)

    # Case 2: non-multiple batch exercising padding + multi-step grid.
    state_big = jax.random.normal(k_state2, (300, num_inputs), jnp.float32)
    act_big = jax.block_until_ready(
        deterministic_net_forward(state_big, params, tm=128))
    ref_big = _reference(state_big, params)
    assert act_big.shape == (300, num_outputs)
    assert jnp.allclose(act_big, ref_big, atol=2e-2, rtol=2e-2)
    assert jnp.all(jnp.abs(act_big) <= 1.0)

    print("KERNEL_OK")
</pallas_src>

<mosaic_0001>
module attributes {stable_mosaic.version = 11 : i64} {
  func.func @deterministic_net_kernel(%arg0: i32, %arg1: memref<8x16xbf16, #tpu.memory_space<vmem>>, %arg2: memref<16x64xbf16, #tpu.memory_space<vmem>>, %arg3: memref<1x64xf32, #tpu.memory_space<vmem>>, %arg4: memref<64x64xbf16, #tpu.memory_space<vmem>>, %arg5: memref<1x64xf32, #tpu.memory_space<vmem>>, %arg6: memref<64x8xbf16, #tpu.memory_space<vmem>>, %arg7: memref<1x8xf32, #tpu.memory_space<vmem>>, %arg8: memref<8x8xf32, #tpu.memory_space<vmem>>) attributes {dimension_semantics = [#tpu.dimension_semantics<parallel>], iteration_bounds = array<i64: 1>, scalar_prefetch = 0 : i64, scratch_operands = 0 : i64, tpu.core_type = #tpu.core_type<tc>, window_params = [{transform_indices = @transform_0, window_bounds = array<i64: 8, 16>}, {pipeline_mode = #tpu.pipeline_mode<synchronous>, transform_indices = @transform_1, window_bounds = array<i64: 16, 64>}, {pipeline_mode = #tpu.pipeline_mode<synchronous>, transform_indices = @transform_2, window_bounds = array<i64: 1, 64>}, {pipeline_mode = #tpu.pipeline_mode<synchronous>, transform_indices = @transform_3, window_bounds = array<i64: 64, 64>}, {pipeline_mode = #tpu.pipeline_mode<synchronous>, transform_indices = @transform_4, window_bounds = array<i64: 1, 64>}, {pipeline_mode = #tpu.pipeline_mode<synchronous>, transform_indices = @transform_5, window_bounds = array<i64: 64, 8>}, {pipeline_mode = #tpu.pipeline_mode<synchronous>, transform_indices = @transform_6, window_bounds = array<i64: 1, 8>}, {transform_indices = @transform_7, window_bounds = array<i64: 8, 8>}]} {
    %c0 = arith.constant 0 : index
    %c0_0 = arith.constant 0 : index
    %0 = vector.load %arg1[%c0, %c0_0] : memref<8x16xbf16, #tpu.memory_space<vmem>>, vector<8x16xbf16>
    %c0_1 = arith.constant 0 : index
    %c0_2 = arith.constant 0 : index
    %1 = vector.load %arg2[%c0_1, %c0_2] : memref<16x64xbf16, #tpu.memory_space<vmem>>, vector<16x64xbf16>
    %cst = arith.constant dense<0.000000e+00> : vector<8x64xf32>
    %2 = tpu.matmul %0, %1, %cst {dimension_numbers = #tpu.dot_dimension_numbers<[1], [0], [0], [1], [0, 0, 1, 1], [], []>} : vector<8x16xbf16>, vector<16x64xbf16>, vector<8x64xf32> -> vector<8x64xf32>
    %c0_3 = arith.constant 0 : index
    %c0_4 = arith.constant 0 : index
    %3 = vector.load %arg3[%c0_3, %c0_4] : memref<1x64xf32, #tpu.memory_space<vmem>>, vector<1x64xf32>
    %4 = vector.shape_cast %3 : vector<1x64xf32> to vector<64xf32>
    %5 = vector.shape_cast %4 : vector<64xf32> to vector<1x64xf32>
    %6 = vector.broadcast %5 : vector<1x64xf32> to vector<8x64xf32>
    %7 = arith.addf %2, %6 : vector<8x64xf32>
    %cst_5 = arith.constant 0.000000e+00 : f32
    %8 = vector.broadcast %cst_5 : f32 to vector<8x64xf32>
    %9 = arith.maximumf %7, %8 : vector<8x64xf32>
    %10 = arith.truncf %9 : vector<8x64xf32> to vector<8x64xbf16>
    %c0_6 = arith.constant 0 : index
    %c0_7 = arith.constant 0 : index
    %11 = vector.load %arg4[%c0_6, %c0_7] : memref<64x64xbf16, #tpu.memory_space<vmem>>, vector<64x64xbf16>
    %cst_8 = arith.constant dense<0.000000e+00> : vector<8x64xf32>
    %12 = tpu.matmul %10, %11, %cst_8 {dimension_numbers = #tpu.dot_dimension_numbers<[1], [0], [0], [1], [0, 0, 1, 1], [], []>} : vector<8x64xbf16>, vector<64x64xbf16>, vector<8x64xf32> -> vector<8x64xf32>
    %c0_9 = arith.constant 0 : index
    %c0_10 = arith.constant 0 : index
    %13 = vector.load %arg5[%c0_9, %c0_10] : memref<1x64xf32, #tpu.memory_space<vmem>>, vector<1x64xf32>
    %14 = vector.shape_cast %13 : vector<1x64xf32> to vector<64xf32>
    %15 = vector.shape_cast %14 : vector<64xf32> to vector<1x64xf32>
    %16 = vector.broadcast %15 : vector<1x64xf32> to vector<8x64xf32>
    %17 = arith.addf %12, %16 : vector<8x64xf32>
    %cst_11 = arith.constant 0.000000e+00 : f32
    %18 = vector.broadcast %cst_11 : f32 to vector<8x64xf32>
    %19 = arith.maximumf %17, %18 : vector<8x64xf32>
    %20 = arith.truncf %19 : vector<8x64xf32> to vector<8x64xbf16>
    %c0_12 = arith.constant 0 : index
    %c0_13 = arith.constant 0 : index
    %21 = vector.load %arg6[%c0_12, %c0_13] : memref<64x8xbf16, #tpu.memory_space<vmem>>, vector<64x8xbf16>
    %cst_14 = arith.constant dense<0.000000e+00> : vector<8x8xf32>
    %22 = tpu.matmul %20, %21, %cst_14 {dimension_numbers = #tpu.dot_dimension_numbers<[1], [0], [0], [1], [0, 0, 1, 1], [], []>} : vector<8x64xbf16>, vector<64x8xbf16>, vector<8x8xf32> -> vector<8x8xf32>
    %c0_15 = arith.constant 0 : index
    %c0_16 = arith.constant 0 : index
    %23 = vector.load %arg7[%c0_15, %c0_16] : memref<1x8xf32, #tpu.memory_space<vmem>>, vector<1x8xf32>
    %24 = vector.shape_cast %23 : vector<1x8xf32> to vector<8xf32>
    %25 = vector.shape_cast %24 : vector<8xf32> to vector<1x8xf32>
    %26 = vector.broadcast %25 : vector<1x8xf32> to vector<8x8xf32>
    %27 = arith.addf %22, %26 : vector<8x8xf32>
    %28 = math.tanh %27 : vector<8x8xf32>
    %c0_17 = arith.constant 0 : index
    %c0_18 = arith.constant 0 : index
    %29 = vector.load %arg8[%c0_17, %c0_18] : memref<8x8xf32, #tpu.memory_space<vmem>>, vector<8x8xf32>
    tpu.vector_store %arg8[%c0_17, %c0_18], %28 {strides = array<i32>} : memref<8x8xf32, #tpu.memory_space<vmem>>, vector<8x8xf32>,
    return
  }
  func.func @transform_0(%arg0: i32) -> (i32, i32) {
    %c0_i32 = arith.constant 0 : i32
    %c0_i32_0 = arith.constant 0 : i32
    return %arg0, %c0_i32 : i32, i32
  }
  func.func @transform_1(%arg0: i32) -> (i32, i32) {
    %c0_i32 = arith.constant 0 : i32
    %c0_i32_0 = arith.constant 0 : i32
    %c0_i32_1 = arith.constant 0 : i32
    return %c0_i32, %c0_i32_0 : i32, i32
  }
  func.func @transform_2(%arg0: i32) -> (i32, i32) {
    %c0_i32 = arith.constant 0 : i32
    %c0_i32_0 = arith.constant 0 : i32
    %c0_i32_1 = arith.constant 0 : i32
    return %c0_i32, %c0_i32_0 : i32, i32
  }
  func.func @transform_3(%arg0: i32) -> (i32, i32) {
    %c0_i32 = arith.constant 0 : i32
    %c0_i32_0 = arith.constant 0 : i32
    %c0_i32_1 = arith.constant 0 : i32
    return %c0_i32, %c0_i32_0 : i32, i32
  }
  func.func @transform_4(%arg0: i32) -> (i32, i32) {
    %c0_i32 = arith.constant 0 : i32
    %c0_i32_0 = arith.constant 0 : i32
    %c0_i32_1 = arith.constant 0 : i32
    return %c0_i32, %c0_i32_0 : i32, i32
  }
  func.func @transform_5(%arg0: i32) -> (i32, i32) {
    %c0_i32 = arith.constant 0 : i32
    %c0_i32_0 = arith.constant 0 : i32
    %c0_i32_1 = arith.constant 0 : i32
    return %c0_i32, %c0_i32_0 : i32, i32
  }
  func.func @transform_6(%arg0: i32) -> (i32, i32) {
    %c0_i32 = arith.constant 0 : i32
    %c0_i32_0 = arith.constant 0 : i32
    %c0_i32_1 = arith.constant 0 : i32
    return %c0_i32, %c0_i32_0 : i32, i32
  }
  func.func @transform_7(%arg0: i32) -> (i32, i32) {
    %c0_i32 = arith.constant 0 : i32
    %c0_i32_0 = arith.constant 0 : i32
    return %arg0, %c0_i32 : i32, i32
  }
}

</mosaic_0001>

<llo_original>
// kernel: tpu_custom_call.1
$region0: #{tpu_custom_call.1}
  #allocation0 [shape = 'u32[]', space=smem, size = 0x4, offset = 0x4, fixed_abs, tag = 'smem constant byte address 0x4 - core index']
  #allocation1 [shape = 'u32[72,128]{1,0:T(1,128)}', space=vmem, size = 0x9000, scoped, tag = 'internal scratch']
  %s0 = inlined_call_operand.vmem [shape: bf16[8,16], index: 0, kind: input, shape index: {}]
  %s1 = inlined_call_operand.hbm [shape: bf16[16,64], index: 1, kind: input, shape index: {}]
  %s2 = inlined_call_operand.hbm [shape: f32[1,64], index: 2, kind: input, shape index: {}]
  %s3 = inlined_call_operand.vmem [shape: bf16[64,64], index: 3, kind: input, shape index: {}]
  %s4 = inlined_call_operand.hbm [shape: f32[1,64], index: 4, kind: input, shape index: {}]
  %s5 = inlined_call_operand.vmem [shape: bf16[64,8], index: 5, kind: input, shape index: {}]
  %s6 = inlined_call_operand.vmem [shape: f32[1,8], index: 6, kind: input, shape index: {}]
  %s7 = inlined_call_operand.hbm [shape: f32[8,8], index: 7, kind: output, shape index: {}]
  %s8 = sld [smem:[#allocation0]]
  $region50: #{tpu_custom_call.1} parent=0
    _
  %s10 = ssub.s32 1, %s8
  %s11 = scalar_select 0, %s10, %s8
  $region1: #{tpu_custom_call.1} parent=0
    #allocation2 [shape = 'u8[4096]{0}', space=vmem, size = 0x1000, scoped, tag = 'input window, operand 1, single buffered']
    #allocation3 [shape = 's32[1]{0}', space=sflag, size = 0x4, scoped, tag = 'scoped memory for tpu_custom_call.1']
    #allocation4 [shape = 's32[1]{0}', space=sflag, size = 0x4, scoped, tag = 'scoped memory for tpu_custom_call.1']
    #allocation5 [shape = 'u8[512]{0}', space=vmem, size = 0x400, scoped, tag = 'input window, operand 2, single buffered']
    #allocation6 [shape = 's32[1]{0}', space=sflag, size = 0x4, scoped, tag = 'scoped memory for tpu_custom_call.1']
    #allocation7 [shape = 'u8[512]{0}', space=vmem, size = 0x400, scoped, tag = 'input window, operand 4, single buffered']
    #allocation8 [shape = 'u8[4096]{0}', space=vmem, size = 0x1000, scoped, tag = 'output window, operand 0, single buffered']
    %12 = vsyncpa [#allocation3], 0
    %13 = vsyncpa [#allocation6], 0
    %14 = vsyncpa [#allocation4], 0
    // Predicated region
    $region2: #{tpu_custom_call.1} parent=1 // pred_check
      _
    $region3: #{tpu_custom_call.1} parent=1 // pred_check_branch
      %16 = sbr.rel (0) target = $region5
    $region4: #{tpu_custom_call.1} parent=1 // pred_region
      _
    $region5: #{tpu_custom_call.1} parent=1 // pred_fallthru
      _
    // Predicated region
    $region6: #{tpu_custom_call.1} parent=1 // pred_check
      _
    $region7: #{tpu_custom_call.1} parent=1 // pred_check_branch
      %18 = sbr.rel (0) target = $region9
    $region8: #{tpu_custom_call.1} parent=1 // pred_region
      %20 = vsyncadd [#allocation3], 0
      %s21 = sshll.u32 %s1, 4
      %s22 = int_to_ptr.hbm [resolvable:$true] %s21
      %s23 = sshll.u32 [#allocation2], 4
      %s24 = int_to_ptr.vmem [resolvable:$true] %s23
      %29 = dma.hbm_to_vmem [thread:$0]  %s22, 128, %s24, [#allocation3], 64, 64, 4
    $region9: #{tpu_custom_call.1} parent=1 // pred_fallthru
      _
    // Predicated region
    $region10: #{tpu_custom_call.1} parent=1 // pred_check
      _
    $region11: #{tpu_custom_call.1} parent=1 // pred_check_branch
      %31 = sbr.rel (0) target = $region13
    $region12: #{tpu_custom_call.1} parent=1 // pred_region
      %33 = vsyncadd [#allocation6], 0
      %s35 = sshll.u32 %s2, 4
      %s36 = int_to_ptr.hbm [resolvable:$true] %s35
      %s37 = sshll.u32 [#allocation5], 4
      %s38 = int_to_ptr.vmem [resolvable:$true] %s37
      %40 = dma.hbm_to_vmem [thread:$0]  %s36, 16, %s38, [#allocation6]
    $region13: #{tpu_custom_call.1} parent=1 // pred_fallthru
      _
    // Predicated region
    $region14: #{tpu_custom_call.1} parent=1 // pred_check
      _
    $region15: #{tpu_custom_call.1} parent=1 // pred_check_branch
      %42 = sbr.rel (0) target = $region17
    $region16: #{tpu_custom_call.1} parent=1 // pred_region
      _
    $region17: #{tpu_custom_call.1} parent=1 // pred_fallthru
      _
    // Predicated region
    $region18: #{tpu_custom_call.1} parent=1 // pred_check
      _
    $region19: #{tpu_custom_call.1} parent=1 // pred_check_branch
      %44 = sbr.rel (0) target = $region21
    $region20: #{tpu_custom_call.1} parent=1 // pred_region
      %46 = vsyncadd [#allocation6], 0
      %s48 = sshll.u32 %s4, 4
      %s49 = int_to_ptr.hbm [resolvable:$true] %s48
      %s50 = sshll.u32 [#allocation7], 4
      %s51 = int_to_ptr.vmem [resolvable:$true] %s50
      %53 = dma.hbm_to_vmem [thread:$0]  %s49, 16, %s51, [#allocation6]
    $region21: #{tpu_custom_call.1} parent=1 // pred_fallthru
      _
    // Predicated region
    $region22: #{tpu_custom_call.1} parent=1 // pred_check
      _
    $region23: #{tpu_custom_call.1} parent=1 // pred_check_branch
      %55 = sbr.rel (0) target = $region25
    $region24: #{tpu_custom_call.1} parent=1 // pred_region
      _
    $region25: #{tpu_custom_call.1} parent=1 // pred_fallthru
      _
    // Predicated region
    $region26: #{tpu_custom_call.1} parent=1 // pred_check
      _
    $region27: #{tpu_custom_call.1} parent=1 // pred_check_branch
      %57 = sbr.rel (0) target = $region29
    $region28: #{tpu_custom_call.1} parent=1 // pred_region
      _
    $region29: #{tpu_custom_call.1} parent=1 // pred_fallthru
      _
    // Predicated region
    $region30: #{tpu_custom_call.1} parent=1 // pred_check
      _
    $region31: #{tpu_custom_call.1} parent=1 // pred_check_branch
      %59 = sbr.rel (0) target = $region33
    $region32: #{tpu_custom_call.1} parent=1 // pred_region
      %61 = dma.done [#allocation3], 128
    $region33: #{tpu_custom_call.1} parent=1 // pred_fallthru
      _
    // Predicated region
    $region34: #{tpu_custom_call.1} parent=1 // pred_check
      _
    $region35: #{tpu_custom_call.1} parent=1 // pred_check_branch
      %63 = sbr.rel (0) target = $region37
    $region36: #{tpu_custom_call.1} parent=1 // pred_region
      %65 = dma.done [#allocation6], 16
    $region37: #{tpu_custom_call.1} parent=1 // pred_fallthru
      _
    // Predicated region
    $region38: #{tpu_custom_call.1} parent=1 // pred_check
      _
    $region39: #{tpu_custom_call.1} parent=1 // pred_check_branch
      %67 = sbr.rel (0) target = $region41
    $region40: #{tpu_custom_call.1} parent=1 // pred_region
      %69 = dma.done [#allocation6], 16
    $region41: #{tpu_custom_call.1} parent=1 // pred_fallthru
      _
    %v71 = vld [vmem:[%s0] sm:$0xf]
    %v72 = vld [vmem:[#allocation2] sm:$0xf]
    %v73 = vld [vmem:[#allocation2 + $0x4] sm:$0xf]
    %v74 = vld [vmem:[#allocation5] sm:$0x1]
    %v76 = vperm.slane %v74, 0
    %v80 = vunpack.c.l.b16 %v72
    %v81 = vunpack.c.l.b16 %v73
    %v82 = vpack.c.b16 %v81, %v80
    %vm84 = vcmask 130048
    %v86 = vsel %vm84, %v71, 0
    %88 = vmatpush.bf16.msra.mxu0 0
    %89 = vmatpush.bf16.msra.mxu0 0
    %90 = vmatpush.bf16.msra.mxu0 0
    %91 = vmatpush.bf16.msra.mxu0 0
    %92 = vmatpush.bf16.msra.mxu0 0
    %93 = vmatpush.bf16.msra.mxu0 0
    %94 = vmatpush.bf16.msra.mxu0 0
    %95 = vmatpush.bf16.msra.mxu0 %v82
    %96 = vmatmul.bf16.gmra.mxu0 %v86
    %v97 = vpop.f32.mrf.mxu0
    %v98 = vadd.f32 %v76, %v97
    %v99 = vpop.f32.mrf.mxu0
    %100 = vdwg.mxu0
    %v101 = vmax.f32 %v98, 0.0
    %v102 = vpack.c.bf16 %v101, %v101
    %v103 = vld [vmem:[%s3] sm:$0xf]
    %v104 = vld [vmem:[%s3 + $0x4] sm:$0xf]
    %v105 = vld [vmem:[%s3 + $0x8] sm:$0xf]
    %v106 = vld [vmem:[%s3 + $0xc] sm:$0xf]
    %v107 = vld [vmem:[%s3 + $0x10] sm:$0xf]
    %v108 = vld [vmem:[%s3 + $0x14] sm:$0xf]
    %v109 = vld [vmem:[%s3 + $0x18] sm:$0xf]
    %v110 = vld [vmem:[%s3 + $0x1c] sm:$0xf]
    %v111 = vld [vmem:[#allocation7] sm:$0x1]
    %v113 = vperm.slane %v111, 0
    %v123 = vunpack.c.l.b16 %v103
    %v124 = vunpack.c.l.b16 %v104
    %v125 = vunpack.c.l.b16 %v105
    %v126 = vunpack.c.l.b16 %v106
    %v127 = vunpack.c.l.b16 %v107
    %v128 = vunpack.c.l.b16 %v108
    %v129 = vunpack.c.l.b16 %v109
    %v130 = vunpack.c.l.b16 %v110
    %v131 = vpack.c.b16 %v124, %v123
    %v132 = vpack.c.b16 %v126, %v125
    %v133 = vpack.c.b16 %v128, %v127
    %v134 = vpack.c.b16 %v130, %v129
    %vm139 = vcmask 523264
    %v141 = vsel %vm139, %v102, 0
    %143 = vmatpush.bf16.msra.mxu0 0
    %144 = vmatpush.bf16.msra.mxu0 0
    %145 = vmatpush.bf16.msra.mxu0 0
    %146 = vmatpush.bf16.msra.mxu0 0
    %147 = vmatpush.bf16.msra.mxu0 %v134
    %148 = vmatpush.bf16.msra.mxu0 %v133
    %149 = vmatpush.bf16.msra.mxu0 %v132
    %150 = vmatpush.bf16.msra.mxu0 %v131
    %151 = vmatmul.bf16.gmra.mxu0 %v141
    %v152 = vpop.f32.mrf.mxu0
    %v153 = vadd.f32 %v113, %v152
    %v154 = vpop.f32.mrf.mxu0
    %155 = vdwg.mxu0
    %v156 = vmax.f32 %v153, 0.0
    %v157 = vpack.c.bf16 %v156, %v156
    %v158 = vld [vmem:[%s5] sm:$0xf]
    %v159 = vld [vmem:[%s5 + $0x4] sm:$0xf]
    %v160 = vld [vmem:[%s5 + $0x8] sm:$0xf]
    %v161 = vld [vmem:[%s5 + $0xc] sm:$0xf]
    %v162 = vld [vmem:[%s5 + $0x10] sm:$0xf]
    %v163 = vld [vmem:[%s5 + $0x14] sm:$0xf]
    %v164 = vld [vmem:[%s5 + $0x18] sm:$0xf]
    %v165 = vld [vmem:[%s5 + $0x1c] sm:$0xf]
    %v166 = vld [vmem:[%s6] sm:$0x1]
    %v168 = vperm.slane %v166, 0
    %v178 = vunpack.c.l.b16 %v158
    %v179 = vunpack.c.l.b16 %v159
    %v180 = vunpack.c.l.b16 %v160
    %v181 = vunpack.c.l.b16 %v161
    %v182 = vunpack.c.l.b16 %v162
    %v183 = vunpack.c.l.b16 %v163
    %v184 = vunpack.c.l.b16 %v164
    %v185 = vunpack.c.l.b16 %v165
    %v186 = vpack.c.b16 %v179, %v178
    %v187 = vpack.c.b16 %v181, %v180
    %v188 = vpack.c.b16 %v183, %v182
    %v189 = vpack.c.b16 %v185, %v184
    %v195 = vsel %vm139, %v157, 0
    %197 = vmatpush.bf16.msra.mxu0 0
    %198 = vmatpush.bf16.msra.mxu0 0
    %199 = vmatpush.bf16.msra.mxu0 0
    %200 = vmatpush.bf16.msra.mxu0 0
    %201 = vmatpush.bf16.msra.mxu0 %v189
    %202 = vmatpush.bf16.msra.mxu0 %v188
    %203 = vmatpush.bf16.msra.mxu0 %v187
    %204 = vmatpush.bf16.msra.mxu0 %v186
    %205 = vmatmul.bf16.gmra.mxu0 %v195
    %v206 = vpop.f32.mrf.mxu0
    %v207 = vadd.f32 %v168, %v206
    %v208 = vpop.f32.mrf.mxu0
    %209 = vdwg.mxu0
    %v210 = vtanh.pop %v207
    %vm211 = vcmask 64512
    %212 = vst.msk [vmem:[#allocation8] sm:$0xff] %vm211, %v210
    // Predicated region
    $region42: #{tpu_custom_call.1} parent=1 // pred_check
      _
    $region43: #{tpu_custom_call.1} parent=1 // pred_check_branch
      %214 = sbr.rel (0) target = $region45
    $region44: #{tpu_custom_call.1} parent=1 // pred_region
      %216 = vsyncadd [#allocation4], 0
      %s218 = sshll.u32 [#allocation8], 4
      %s219 = int_to_ptr.vmem [resolvable:$true] %s218
      %s220 = sshll.u32 %s7, 4
      %s221 = int_to_ptr.hbm [resolvable:$true] %s220
      %223 = dma.vmem_to_hbm [thread:$0]  %s219, 128, %s221, [#allocation4]
    $region45: #{tpu_custom_call.1} parent=1 // pred_fallthru
      _
    // Predicated region
    $region46: #{tpu_custom_call.1} parent=1 // pred_check
      _
    $region47: #{tpu_custom_call.1} parent=1 // pred_check_branch
      %225 = sbr.rel (0) target = $region49
    $region48: #{tpu_custom_call.1} parent=1 // pred_region
      %227 = dma.done [#allocation4], 128
    $region49: #{tpu_custom_call.1} parent=1 // pred_fallthru
      _
    %228 = vsyncpa [#allocation3], 1
    %229 = vsyncpa [#allocation6], 1
    %230 = vsyncpa [#allocation4], 1

</llo_original>
